<compile_context>
chip_gen: v6e
topology: v6e:2x2x1
jax: 0.10.0
libtpu: 0.0.40
codegen_flags: <defaults>
</compile_context>

<pallas_src>
import jax
import jax.numpy as jnp
from jax.experimental import pallas as pl
from jax.experimental.pallas import tpu as pltpu


# ----------------------------------------------------------------------------
# Kernels
# ----------------------------------------------------------------------------
def _linear_kernel_direct(x_ref, w_ref, b_ref, o_ref):
    """f32 output: accumulate straight into the resident output tile."""
    k = pl.program_id(2)

    @pl.when(k == 0)
    def _():
        o_ref[...] = jnp.broadcast_to(
            b_ref[...].astype(o_ref.dtype), o_ref.shape)

    # (tm, tk) @ (tk, tn) -> (tm, tn) on the MXU, f32 accumulation.
    o_ref[...] += jnp.dot(x_ref[...], w_ref[...],
                          preferred_element_type=jnp.float32)


def _linear_kernel_scratch(x_ref, w_ref, b_ref, o_ref, acc_ref):
    """Non-f32 output: f32 VMEM accumulator, bias + cast in the epilogue."""
    k = pl.program_id(2)

    @pl.when(k == 0)
    def _():
        acc_ref[...] = jnp.zeros_like(acc_ref)

    acc_ref[...] += jnp.dot(x_ref[...], w_ref[...],
                            preferred_element_type=jnp.float32)

    @pl.when(k == pl.num_programs(2) - 1)
    def _():
        o_ref[...] = (acc_ref[...] + b_ref[...].astype(jnp.float32)).astype(
            o_ref.dtype)


# ----------------------------------------------------------------------------
# Wrapper
# ----------------------------------------------------------------------------
def _round_up(v, m):
    return ((v + m - 1) // m) * m


def _cdiv(a, b):
    return (a + b - 1) // b


def custom_linear_b(x, weight, bias=None, *, tm=None, tn=None, tk=None,
                    compute_in_bf16=False, force_pallas=False,
                    vmem_limit_bytes=None):
    """Pallas TPU implementation of CustomLinearB.forward.

    x: [..., in_features]; weight: [out_features, in_features];
    bias: [out_features] or None.  Returns [..., out_features] (x.dtype).
    """
    orig_shape = x.shape
    out_dtype = x.dtype
    K = orig_shape[-1]
    N = weight.shape[0]
    x2d = x.reshape(-1, K)
    M = x2d.shape[0]

    if bias is None:
        bias = jnp.zeros((N,), dtype=out_dtype)

    # Tiny-layer fallback: padding N/K up to 128 wastes most MXU lanes and the
    # fixed pallas_call/grid overhead dominates — XLA's fused matmul wins.
    if not force_pallas and (N < 128 or K < 128):
        return (jnp.matmul(x, weight.T) + bias).astype(out_dtype)

    # --- tile selection --------------------------------------------------
    granule = 16 if compute_in_bf16 else 8      # sublane granule (bf16 packs 2)
    if tm is None:
        tm = min(512, _round_up(M, granule))
    if tn is None:
        tn = min(1024, _round_up(N, 128))       # lane-dense output tile
    if tk is None:
        tk = min(512, _round_up(K, 128))
    tm = _round_up(tm, granule)
    tn = _round_up(tn, 128)
    tk = _round_up(tk, 128)

    # Megacore balance (v7x has 2 TensorCores): prefer >=2 parallel blocks,
    # shrinking tm before tn.
    if _cdiv(M, tm) * _cdiv(N, tn) < 2 and M > granule:
        tm = max(granule, _round_up(_cdiv(M, 2), granule))

    # --- operand prep: K zero-pad only, one-time weight transpose ---------
    Kp = _round_up(K, tk)
    w_t = weight.T                              # [K, N] canonical MXU layout
    if Kp != K:
        x2d = jnp.pad(x2d, ((0, 0), (0, Kp - K)))
        w_t = jnp.pad(w_t, ((0, Kp - K), (0, 0)))

    if compute_in_bf16:
        x2d = x2d.astype(jnp.bfloat16)
        w_t = w_t.astype(jnp.bfloat16)

    b2d = bias.reshape(1, N)

    grid = (_cdiv(M, tm), _cdiv(N, tn), Kp // tk)

    use_scratch = jnp.dtype(out_dtype) != jnp.dtype(jnp.float32)
    kernel = _linear_kernel_scratch if use_scratch else _linear_kernel_direct
    scratch_shapes = ([pltpu.VMEM((tm, tn), jnp.float32)]
                      if use_scratch else [])

    if vmem_limit_bytes is None:
        in_bytes = x2d.dtype.itemsize
        need = (2 * (tm * tk + tk * tn) * in_bytes          # double-buffered in
                + tm * tn * jnp.dtype(out_dtype).itemsize   # resident out tile
                + (tm * tn * 4 if use_scratch else 0)       # f32 accumulator
                + 4 * tn * 4)                                # bias tiles
        vmem_limit_bytes = int(min(max(32 << 20, 2 * need), 64 << 20))

    cost = pl.CostEstimate(
        flops=2 * M * N * K,
        transcendentals=0,
        bytes_accessed=(x2d.size * x2d.dtype.itemsize
                        + w_t.size * w_t.dtype.itemsize
                        + bias.size * bias.dtype.itemsize
                        + M * N * jnp.dtype(out_dtype).itemsize),
    )

    out2d = pl.pallas_call(
        kernel,
        out_shape=jax.ShapeDtypeStruct((M, N), out_dtype),
        grid_spec=pltpu.PrefetchScalarGridSpec(
            num_scalar_prefetch=0,
            grid=grid,
            in_specs=[
                pl.BlockSpec((tm, tk), lambda i, j, k: (i, k)),   # x    [M, Kp]
                pl.BlockSpec((tk, tn), lambda i, j, k: (k, j)),   # W^T  [Kp, N]
                pl.BlockSpec((1, tn), lambda i, j, k: (0, j)),    # bias [1, N]
            ],
            out_specs=pl.BlockSpec((tm, tn), lambda i, j, k: (i, j)),
            scratch_shapes=scratch_shapes,
        ),
        compiler_params=pltpu.CompilerParams(
            dimension_semantics=("parallel", "parallel", "arbitrary"),
            vmem_limit_bytes=vmem_limit_bytes,
        ),
        cost_estimate=cost,
    )(x2d, w_t, b2d)

    return out2d.reshape(*orig_shape[:-1], N)


# ----------------------------------------------------------------------------
# Self-test
# ----------------------------------------------------------------------------
if __name__ == "__main__":
    key = jax.random.PRNGKey(0)
    kx, kw, kb, kx2, kw2, kb2 = jax.random.split(key, 6)

    # ---- Pallas path: small but lane-friendly feature dims ----------------
    batch, seq, in_features, out_features = 2, 8, 256, 128
    bound = 1.0 / (in_features ** 0.5)
    x = jax.random.normal(kx, (batch, seq, in_features), dtype=jnp.float32)
    weight = jax.random.uniform(kw, (out_features, in_features),
                                minval=-bound, maxval=bound, dtype=jnp.float32)
    bias = jax.random.uniform(kb, (out_features,),
                              minval=-bound, maxval=bound, dtype=jnp.float32)

    y = jax.block_until_ready(custom_linear_b(x, weight, bias,
                                              force_pallas=True))
    y_ref = jnp.matmul(x, weight.T,
                       precision=jax.lax.Precision.HIGHEST) + bias
    assert y.shape == (batch, seq, out_features)
    assert float(jnp.max(jnp.abs(y - y_ref))) < 1e-2

    # ---- Ragged M and non-multiple-of-128 N (partial edge blocks) ---------
    out_r = 200
    w_r = jax.random.uniform(kw2, (out_r, in_features),
                             minval=-bound, maxval=bound, dtype=jnp.float32)
    b_r = jax.random.uniform(kb2, (out_r,),
                             minval=-bound, maxval=bound, dtype=jnp.float32)
    x_r = jax.random.normal(kx2, (3, 5, in_features), dtype=jnp.float32)
    y_r = jax.block_until_ready(custom_linear_b(x_r, w_r, b_r,
                                                force_pallas=True))
    y_r_ref = jnp.matmul(x_r, w_r.T,
                         precision=jax.lax.Precision.HIGHEST) + b_r
    assert y_r.shape == (3, 5, out_r)
    assert float(jnp.max(jnp.abs(y_r - y_r_ref))) < 1e-2

    # ---- Optional bf16-compute path (f32 accumulation) --------------------
    y_bf = jax.block_until_ready(custom_linear_b(x, weight, bias,
                                                 compute_in_bf16=True,
                                                 force_pallas=True))
    assert float(jnp.max(jnp.abs(y_bf - y_ref))) < 5e-2

    # ---- Tiny-layer fallback (matches the module's placeholder sizes) -----
    x_s = jax.random.normal(kx, (8, 32), dtype=jnp.float32)
    w_s = jax.random.uniform(kw, (16, 32), minval=-0.2, maxval=0.2,
                             dtype=jnp.float32)
    b_s = jax.random.uniform(kb, (16,), minval=-0.2, maxval=0.2,
                             dtype=jnp.float32)
    y_s = jax.block_until_ready(custom_linear_b(x_s, w_s, b_s))
    y_s_ref = x_s @ w_s.T + b_s
    assert jnp.allclose(y_s, y_s_ref, atol=1e-5, rtol=1e-5)

    print("KERNEL_OK")
</pallas_src>

<mosaic_0001>
module attributes {stable_mosaic.version = 11 : i64} {
  func.func @_linear_kernel_direct(%arg0: i32, %arg1: i32, %arg2: i32, %arg3: memref<8x256xf32, #tpu.memory_space<vmem>>, %arg4: memref<256x128xf32, #tpu.memory_space<vmem>>, %arg5: memref<1x128xf32, #tpu.memory_space<vmem>>, %arg6: memref<8x128xf32, #tpu.memory_space<vmem>>) attributes {dimension_semantics = [#tpu.dimension_semantics<parallel>, #tpu.dimension_semantics<parallel>, #tpu.dimension_semantics<arbitrary>], iteration_bounds = array<i64: 2, 1, 1>, scalar_prefetch = 0 : i64, scratch_operands = 0 : i64, tpu.core_type = #tpu.core_type<tc>, window_params = [{transform_indices = @transform_0, window_bounds = array<i64: 8, 256>}, {transform_indices = @transform_1, window_bounds = array<i64: 256, 128>}, {transform_indices = @transform_2, window_bounds = array<i64: 1, 128>}, {transform_indices = @transform_3, window_bounds = array<i64: 8, 128>}]} {
    %c0_i32 = arith.constant 0 : i32
    %0 = arith.cmpi eq, %arg2, %c0_i32 : i32
    %1 = arith.extui %0 : i1 to i32
    %c0_i32_0 = arith.constant 0 : i32
    %2 = arith.cmpi ne, %1, %c0_i32_0 : i32
    scf.if %2 {
      %c0_8 = arith.constant 0 : index
      %c0_9 = arith.constant 0 : index
      %9 = vector.load %arg5[%c0_8, %c0_9] : memref<1x128xf32, #tpu.memory_space<vmem>>, vector<1x128xf32>
      %10 = vector.shape_cast %9 : vector<1x128xf32> to vector<1x128xf32>
      %11 = vector.broadcast %10 : vector<1x128xf32> to vector<8x128xf32>
      %c0_10 = arith.constant 0 : index
      %c0_11 = arith.constant 0 : index
      %12 = vector.load %arg6[%c0_10, %c0_11] : memref<8x128xf32, #tpu.memory_space<vmem>>, vector<8x128xf32>
      tpu.vector_store %arg6[%c0_10, %c0_11], %11 {strides = array<i32>} : memref<8x128xf32, #tpu.memory_space<vmem>>, vector<8x128xf32>,
    } else {
    }
    %c0 = arith.constant 0 : index
    %c0_1 = arith.constant 0 : index
    %3 = vector.load %arg6[%c0, %c0_1] : memref<8x128xf32, #tpu.memory_space<vmem>>, vector<8x128xf32>
    %c0_2 = arith.constant 0 : index
    %c0_3 = arith.constant 0 : index
    %4 = vector.load %arg3[%c0_2, %c0_3] : memref<8x256xf32, #tpu.memory_space<vmem>>, vector<8x256xf32>
    %c0_4 = arith.constant 0 : index
    %c0_5 = arith.constant 0 : index
    %5 = vector.load %arg4[%c0_4, %c0_5] : memref<256x128xf32, #tpu.memory_space<vmem>>, vector<256x128xf32>
    %cst = arith.constant dense<0.000000e+00> : vector<8x128xf32>
    %6 = tpu.matmul %4, %5, %cst {dimension_numbers = #tpu.dot_dimension_numbers<[1], [0], [0], [1], [0, 0, 1, 1], [], []>} : vector<8x256xf32>, vector<256x128xf32>, vector<8x128xf32> -> vector<8x128xf32>
    %7 = arith.addf %3, %6 : vector<8x128xf32>
    %c0_6 = arith.constant 0 : index
    %c0_7 = arith.constant 0 : index
    %8 = vector.load %arg6[%c0_6, %c0_7] : memref<8x128xf32, #tpu.memory_space<vmem>>, vector<8x128xf32>
    tpu.vector_store %arg6[%c0_6, %c0_7], %7 {strides = array<i32>} : memref<8x128xf32, #tpu.memory_space<vmem>>, vector<8x128xf32>,
    return
  }
  func.func @transform_0(%arg0: i32, %arg1: i32, %arg2: i32) -> (i32, i32) {
    %c0_i32 = arith.constant 0 : i32
    return %arg0, %arg2 : i32, i32
  }
  func.func @transform_1(%arg0: i32, %arg1: i32, %arg2: i32) -> (i32, i32) {
    %c0_i32 = arith.constant 0 : i32
    return %arg2, %arg1 : i32, i32
  }
  func.func @transform_2(%arg0: i32, %arg1: i32, %arg2: i32) -> (i32, i32) {
    %c0_i32 = arith.constant 0 : i32
    %c0_i32_0 = arith.constant 0 : i32
    return %c0_i32, %arg1 : i32, i32
  }
  func.func @transform_3(%arg0: i32, %arg1: i32, %arg2: i32) -> (i32, i32) {
    %c0_i32 = arith.constant 0 : i32
    return %arg0, %arg1 : i32, i32
  }
}

</mosaic_0001>

<llo_original>
// kernel: tpu_custom_call.1
$region0: #{tpu_custom_call.1}
  #allocation0 [shape = 'u32[]', space=smem, size = 0x4, offset = 0x4, fixed_abs, tag = 'smem constant byte address 0x4 - core index']
  #allocation1 [shape = 'u32[144,128]{1,0:T(1,128)}', space=vmem, size = 0x12000, scoped, tag = 'internal scratch']
  %s0 = inlined_call_operand.hbm [shape: f32[16,256], index: 0, kind: input, shape index: {}]
  %s1 = inlined_call_operand.hbm [shape: f32[256,128], index: 1, kind: input, shape index: {}]
  %s2 = inlined_call_operand.vmem [shape: f32[1,128], index: 2, kind: input, shape index: {}]
  %s3 = inlined_call_operand.hbm [shape: f32[16,128], index: 3, kind: output, shape index: {}]
  %s4 = sld [smem:[#allocation0]]
  $region57: #{tpu_custom_call.1} parent=0
    _
  %s6 = ssub.s32 1, %s4
  %s7 = scalar_select 0, %s6, %s4
  $region1: #{tpu_custom_call.1} parent=0
    #allocation2 [shape = 'u8[16384]{0}', space=vmem, size = 0x4000, scoped, tag = 'input window, operand 0']
    #allocation3 [shape = 's32[2]{0}', space=sflag, size = 0x8, scoped, tag = 'scoped memory for tpu_custom_call.1']
    #allocation4 [shape = 's32[2]{0}', space=sflag, size = 0x8, scoped, tag = 'scoped memory for tpu_custom_call.1']
    #allocation5 [shape = 'u8[131072]{0}', space=vmem, size = 0x20000, scoped, tag = 'input window, operand 1, single buffered']
    #allocation6 [shape = 's32[1]{0}', space=sflag, size = 0x4, scoped, tag = 'scoped memory for tpu_custom_call.1']
    #allocation7 [shape = 'u8[8192]{0}', space=vmem, size = 0x2000, scoped, tag = 'output window, operand 0']
    %8 = vsyncpa [#allocation3], 0
    %s9 = scalar_lea.sflag [#allocation3], 1
    %10 = vsyncpa %s9, 0
    %11 = vsyncpa [#allocation6], 0
    %12 = vsyncpa [#allocation4], 0
    %s13 = scalar_lea.sflag [#allocation4], 1
    %14 = vsyncpa %s13, 0
    loop: start=0, step=1, limit=4
    $region2: #{tpu_custom_call.1} parent=1 // loop_pre_header
      _
    $region3: #{tpu_custom_call.1} parent=1 // loop_header
      %s16 = sphi 0, %s20
      %p17 = scmp.ge.s32.totalorder %s16, 4
      %s23 = sphi 0, %s42
      %s24 = sphi 0, %s38
      %s25 = sphi 0, %s34
      %s26 = sphi 0, %s23
      %s27 = sphi 0, %s24
      %s28 = sphi 0, %s25
      %s29 = sphi 0, %s26
      %s30 = sphi 0, %s27
      %s31 = sphi 0, %s28
      %s47 = sphi 0, %s49
      %s50 = sphi 0, %s47
      %s51 = sphi 0, %s50
      %s67 = sphi 0, %s51
      %s75 = sphi 0, %s77
      %s78 = sphi 0, %s75
      %s79 = sphi 0, %s78
      %s95 = sphi 0, %s79
      %s101 = sphi 0, %s103
      %s104 = sphi 0, %s101
      %s105 = sphi 0, %s104
      %s121 = sphi 0, %s105
      %s129 = sphi 0, %s131
      %s132 = sphi 0, %s129
      %s133 = sphi 0, %s132
      %s149 = sphi 0, %s133
    $region4: #{tpu_custom_call.1} parent=1 // loop_header_branch
      %19 = sbr.rel (%p17) target = $region8
    $region5: #{tpu_custom_call.1} parent=1 // loop_body
      %s21 = ssub.s32 %s16, 1
      %s22 = ssub.s32 %s16, 2
      %s32 = sadd.s32 1, %s25
      %p33 = scmp.ge.s32.totalorder %s32, 1
      %s34 = scalar_select %p33, 0, %s32
      %s35 = sadd.s32 1, %s24
      %s36 = scalar_select %p33, %s35, %s24
      %p37 = scmp.ge.s32.totalorder %s36, 1
      %s38 = scalar_select %p37, 0, %s36
      %s39 = sadd.s32 1, %s23
      %s40 = scalar_select %p37, %s39, %s23
      %p41 = scmp.ge.s32.totalorder %s40, 2
      %s42 = scalar_select %p41, 0, %s40
      %s43 = ssub.s32 %s23, %s42
      %s44 = ssub.s32 %s25, %s34
      %s45 = sor.u32 %s43, %s44
      %p46 = scmp.eq.s32.totalorder %s45, 0
      %s48 = sadd.s32 %s47, 1
      %s49 = scalar_select %p46, %s47, %s48
      %p52 = pneg %p46
      %p53 = scmp.eq.s32.totalorder %s16, 1
      %p54 = por %p52, %p53
      %p55 = scmp.ne.s32.totalorder %s47, %s50
      %p56 = scmp.eq.s32.totalorder %s16, 0
      %p57 = por %p55, %p56
      %p58 = scmp.ne.s32.totalorder %s47, %s50
      %p59 = scmp.eq.s32.totalorder %s21, 1
      %p60 = por %p58, %p59
      %p61 = scmp.ne.s32.totalorder %s50, %s51
      %p62 = scmp.eq.s32.totalorder %s21, 0
      %p63 = por %p61, %p62
      %p64 = scmp.ne.s32.totalorder %s50, %s51
      %p65 = scmp.eq.s32.totalorder %s22, 1
      %p66 = por %p64, %p65
      %p68 = scmp.ne.s32.totalorder %s51, %s67
      %p69 = scmp.eq.s32.totalorder %s22, 0
      %p70 = por %p68, %p69
      %s71 = ssub.s32 %s25, %s34
      %s72 = ssub.s32 %s24, %s38
      %s73 = sor.u32 %s71, %s72
      %p74 = scmp.eq.s32.totalorder %s73, 0
      %s76 = sadd.s32 %s75, 1
      %s77 = scalar_select %p74, %s75, %s76
      %p80 = pneg %p74
      %p81 = scmp.eq.s32.totalorder %s16, 1
      %p82 = por %p80, %p81
      %p83 = scmp.ne.s32.totalorder %s75, %s78
      %p84 = scmp.eq.s32.totalorder %s16, 0
      %p85 = por %p83, %p84
      %p86 = scmp.ne.s32.totalorder %s75, %s78
      %p87 = scmp.eq.s32.totalorder %s21, 1
      %p88 = por %p86, %p87
      %p89 = scmp.ne.s32.totalorder %s78, %s79
      %p90 = scmp.eq.s32.totalorder %s21, 0
      %p91 = por %p89, %p90
      %p92 = scmp.ne.s32.totalorder %s78, %s79
      %p93 = scmp.eq.s32.totalorder %s22, 1
      %p94 = por %p92, %p93
      %p96 = scmp.ne.s32.totalorder %s79, %s95
      %p97 = scmp.eq.s32.totalorder %s22, 0
      %p98 = por %p96, %p97
      %s99 = ssub.s32 %s24, %s38
      %p100 = scmp.eq.s32.totalorder %s99, 0
      %s102 = sadd.s32 %s101, 1
      %s103 = scalar_select %p100, %s101, %s102
      %p106 = pneg %p100
      %p107 = scmp.eq.s32.totalorder %s16, 1
      %p108 = por %p106, %p107
      %p109 = scmp.ne.s32.totalorder %s101, %s104
      %p110 = scmp.eq.s32.totalorder %s16, 0
      %p111 = por %p109, %p110
      %p112 = scmp.ne.s32.totalorder %s101, %s104
      %p113 = scmp.eq.s32.totalorder %s21, 1
      %p114 = por %p112, %p113
      %p115 = scmp.ne.s32.totalorder %s104, %s105
      %p116 = scmp.eq.s32.totalorder %s21, 0
      %p117 = por %p115, %p116
      %p118 = scmp.ne.s32.totalorder %s104, %s105
      %p119 = scmp.eq.s32.totalorder %s22, 1
      %p120 = por %p118, %p119
      %p122 = scmp.ne.s32.totalorder %s105, %s121
      %p123 = scmp.eq.s32.totalorder %s22, 0
      %p124 = por %p122, %p123
      %s125 = ssub.s32 %s23, %s42
      %s126 = ssub.s32 %s24, %s38
      %s127 = sor.u32 %s125, %s126
      %p128 = scmp.eq.s32.totalorder %s127, 0
      %s130 = sadd.s32 %s129, 1
      %s131 = scalar_select %p128, %s129, %s130
      %p134 = pneg %p128
      %p135 = scmp.eq.s32.totalorder %s16, 1
      %p136 = por %p134, %p135
      %p137 = scmp.ne.s32.totalorder %s129, %s132
      %p138 = scmp.eq.s32.totalorder %s16, 0
      %p139 = por %p137, %p138
      %p140 = scmp.ne.s32.totalorder %s129, %s132
      %p141 = scmp.eq.s32.totalorder %s21, 1
      %p142 = por %p140, %p141
      %p143 = scmp.ne.s32.totalorder %s132, %s133
      %p144 = scmp.eq.s32.totalorder %s21, 0
      %p145 = por %p143, %p144
      %p146 = scmp.ne.s32.totalorder %s132, %s133
      %p147 = scmp.eq.s32.totalorder %s22, 1
      %p148 = por %p146, %p147
      %p150 = scmp.ne.s32.totalorder %s133, %s149
      %p151 = scmp.eq.s32.totalorder %s22, 0
      %p152 = por %p150, %p151
      %p153 = scmp.le.s32.totalorder 1, %s16
      %p154 = scmp.lt.s32.totalorder %s16, 3
      %p155 = pnand %p153, %p154
      %p156 = pneg %p155
      // Predicated region
      $region9: #{tpu_custom_call.1} parent=5 // pred_check
        _
      $region10: #{tpu_custom_call.1} parent=5 // pred_check_branch
        %158 = sbr.rel (%p155) target = $region12
      $region11: #{tpu_custom_call.1} parent=5 // pred_region
        %s159 = ssub.s32 %s16, 1
        // Predicated region
        $region13: #{tpu_custom_call.1} parent=11 // pred_check
          %p160 = pneg %p91
        $region14: #{tpu_custom_call.1} parent=11 // pred_check_branch
          %162 = sbr.rel (%p160) target = $region16
        $region15: #{tpu_custom_call.1} parent=11 // pred_region
          %s163 = smul.u32 32, %s28
          %s165 = ssub.s32 4096, 4096
          %166 = vsyncadd [#allocation6], %s165
          %s167 = sadd.s32 %s27, %s163
          %s168 = smul.addr %s167, 128
          %s169 = scalar_lea.hbm %s1, %s168
          %s170 = sshll.u32 [#allocation5], 4
          %s171 = int_to_ptr.vmem [resolvable:$true] %s170
          %176 = dma.hbm_to_vmem [thread:$0]  %s169, 4096, %s171, [#allocation6], 128, 128, 8
        $region16: #{tpu_custom_call.1} parent=11 // pred_fallthru
          _
        // Predicated region
        $region17: #{tpu_custom_call.1} parent=11 // pred_check
          %p177 = pneg %p117
        $region18: #{tpu_custom_call.1} parent=11 // pred_check_branch
          %179 = sbr.rel (%p177) target = $region20
        $region19: #{tpu_custom_call.1} parent=11 // pred_region
          %p180 = scmp.lt.s32.totalorder %s27, 0
          %s181 = scalar_select %p180, %s27, 0
          %s182 = scalar_lea.vmem %s2, %s181
        $region20: #{tpu_custom_call.1} parent=11 // pred_fallthru
          _
      $region12: #{tpu_custom_call.1} parent=5 // pred_fallthru
        _
      %p183 = scmp.lt.s32.totalorder %s16, 2
      // Predicated region
      $region21: #{tpu_custom_call.1} parent=5 // pred_check
        %p184 = pneg %p183
      $region22: #{tpu_custom_call.1} parent=5 // pred_check_branch
        %186 = sbr.rel (%p184) target = $region24
      $region23: #{tpu_custom_call.1} parent=5 // pred_region
        // Predicated region
        $region25: #{tpu_custom_call.1} parent=23 // pred_check
          %p187 = pneg %p57
        $region26: #{tpu_custom_call.1} parent=23 // pred_check_branch
          %189 = sbr.rel (%p187) target = $region28
        $region27: #{tpu_custom_call.1} parent=23 // pred_region
          %s190 = sand.u32 %s47, 1
          %s191 = scalar_lea.sflag [#allocation3], %s190
          %s192 = sand.u32 %s47, 1
          %s193 = smul.addr %s192, 16
          %s194 = scalar_lea.vmem [#allocation2], %s193
          %s195 = smul.u32 2, %s25
          %s197 = ssub.s32 256, 256
          %198 = vsyncadd %s191, %s197
          %s199 = smul.addr %s23, 2
          %s200 = sadd.s32 %s195, %s199
          %s201 = smul.addr %s200, 128
          %s202 = scalar_lea.hbm %s0, %s201
          %s204 = sshll.u32 %s194, 4
          %s205 = int_to_ptr.vmem [resolvable:$true] %s204
          %207 = dma.hbm_to_vmem [thread:$0]  %s202, 256, %s205, %s191
        $region28: #{tpu_custom_call.1} parent=23 // pred_fallthru
          _
      $region24: #{tpu_custom_call.1} parent=5 // pred_fallthru
        _
      %p208 = scmp.le.s32.totalorder 1, %s16
      %p209 = scmp.lt.s32.totalorder %s16, 3
      %p210 = pnand %p208, %p209
      %p211 = pneg %p210
      // Predicated region
      $region29: #{tpu_custom_call.1} parent=5 // pred_check
        _
      $region30: #{tpu_custom_call.1} parent=5 // pred_check_branch
        %213 = sbr.rel (%p210) target = $region32
      $region31: #{tpu_custom_call.1} parent=5 // pred_region
        %s214 = ssub.s32 %s16, 1
        %s215 = sand.u32 %s50, 1
        %s216 = scalar_lea.sflag [#allocation3], %s215
        %s217 = sand.u32 %s50, 1
        %s218 = smul.addr %s217, 16
        %s219 = scalar_lea.vmem [#allocation2], %s218
        // Predicated region
        $region33: #{tpu_custom_call.1} parent=31 // pred_check
          %p220 = pneg %p63
        $region34: #{tpu_custom_call.1} parent=31 // pred_check_branch
          %222 = sbr.rel (%p220) target = $region36
        $region35: #{tpu_custom_call.1} parent=31 // pred_region
          %223 = dma.done %s216, 256
        $region36: #{tpu_custom_call.1} parent=31 // pred_fallthru
          _
        // Predicated region
        $region37: #{tpu_custom_call.1} parent=31 // pred_check
          %p224 = pneg %p91
        $region38: #{tpu_custom_call.1} parent=31 // pred_check_branch
          %226 = sbr.rel (%p224) target = $region40
        $region39: #{tpu_custom_call.1} parent=31 // pred_region
          %227 = dma.done [#allocation6], 4096
        $region40: #{tpu_custom_call.1} parent=31 // pred_fallthru
          _
        %s228 = sand.u32 %s50, 1
        %s229 = scalar_lea.sflag [#allocation3], %s228
        %s230 = sand.u32 %s50, 1
        %s231 = smul.addr %s230, 16
        %s232 = scalar_lea.vmem [#allocation2], %s231
        %p233 = pneg %p63
        %p234 = pneg %p60
        %p235 = pneg %p91
        %p236 = pneg %p88
        %p237 = scmp.lt.s32.totalorder %s27, 0
        %s238 = scalar_select %p237, %s27, 0
        %s239 = scalar_lea.vmem %s2, %s238
        %p240 = pneg %p117
        %p241 = pneg %p114
        %p242 = pneg %p145
        %p243 = pneg %p142
        %s244 = sand.u32 %s132, 1
        %s245 = scalar_lea.sflag [#allocation4], %s244
        %s246 = sand.u32 %s132, 1
        %s247 = smul.addr %s246, 8
        %s248 = scalar_lea.vmem [#allocation7], %s247
        %s249 = smul.u32 2, %s28
        %s250 = smul.u32 32, %s28
        %p251 = scmp.lt.s32.totalorder %s27, 0
        %s252 = scalar_select %p251, %s27, 0
        %s253 = scalar_lea.vmem %s2, %s252
        %p254 = scmp.eq.s32.totalorder %s28, 0
        // Predicated region
        $region41: #{tpu_custom_call.1} parent=31 // pred_check
          %p255 = pneg %p254
        $region42: #{tpu_custom_call.1} parent=31 // pred_check_branch
          %257 = sbr.rel (%p255) target = $region44
        $region43: #{tpu_custom_call.1} parent=31 // pred_region
          %v258 = vld [vmem:[%s253] sm:$0x1]
          %v260 = vlaneseq
          %v261 = vshrl.u32 %v260, 7
          %v262 = vsub.s32 0, %v261
          %v263 = vrot.slane %v258, %v262
          %265 = vst [vmem:[%s248] sm:$0xff] %v263
        $region44: #{tpu_custom_call.1} parent=31 // pred_fallthru
          _
        %v266 = vld [vmem:[%s248] sm:$0xff]
        %v267 = vld [vmem:[%s219] sm:$0xff]
        %v268 = vld [vmem:[%s219 + $0x8] sm:$0xff]
        %v269 = vld [vmem:[#allocation5] sm:$0xff]
        %v270 = vld [vmem:[#allocation5 + $0x8] sm:$0xff]
        %v271 = vld [vmem:[#allocation5 + $0x10] sm:$0xff]
        %v272 = vld [vmem:[#allocation5 + $0x18] sm:$0xff]
        %v273 = vld [vmem:[#allocation5 + $0x20] sm:$0xff]
        %v274 = vld [vmem:[#allocation5 + $0x28] sm:$0xff]
        %v275 = vld [vmem:[#allocation5 + $0x30] sm:$0xff]
        %v276 = vld [vmem:[#allocation5 + $0x38] sm:$0xff]
        %v277 = vld [vmem:[#allocation5 + $0x40] sm:$0xff]
        %v278 = vld [vmem:[#allocation5 + $0x48] sm:$0xff]
        %v279 = vld [vmem:[#allocation5 + $0x50] sm:$0xff]
        %v280 = vld [vmem:[#allocation5 + $0x58] sm:$0xff]
        %v281 = vld [vmem:[#allocation5 + $0x60] sm:$0xff]
        %v282 = vld [vmem:[#allocation5 + $0x68] sm:$0xff]
        %v283 = vld [vmem:[#allocation5 + $0x70] sm:$0xff]
        %v284 = vld [vmem:[#allocation5 + $0x78] sm:$0xff]
        %v285 = vld [vmem:[#allocation5 + $0x80] sm:$0xff]
        %v286 = vld [vmem:[#allocation5 + $0x88] sm:$0xff]
        %v287 = vld [vmem:[#allocation5 + $0x90] sm:$0xff]
        %v288 = vld [vmem:[#allocation5 + $0x98] sm:$0xff]
        %v289 = vld [vmem:[#allocation5 + $0xa0] sm:$0xff]
        %v290 = vld [vmem:[#allocation5 + $0xa8] sm:$0xff]
        %v291 = vld [vmem:[#allocation5 + $0xb0] sm:$0xff]
        %v292 = vld [vmem:[#allocation5 + $0xb8] sm:$0xff]
        %v293 = vld [vmem:[#allocation5 + $0xc0] sm:$0xff]
        %v294 = vld [vmem:[#allocation5 + $0xc8] sm:$0xff]
        %v295 = vld [vmem:[#allocation5 + $0xd0] sm:$0xff]
        %v296 = vld [vmem:[#allocation5 + $0xd8] sm:$0xff]
        %v297 = vld [vmem:[#allocation5 + $0xe0] sm:$0xff]
        %v298 = vld [vmem:[#allocation5 + $0xe8] sm:$0xff]
        %v299 = vld [vmem:[#allocation5 + $0xf0] sm:$0xff]
        %v300 = vld [vmem:[#allocation5 + $0xf8] sm:$0xff]
        %301 = vmatprep.subr.mxu0 0.0
        %302 = vmatpush1.msra.mxu0 %v284
        %303 = vmatprep.subr.mxu0 0.0
        %304 = vmatpush1.msra.mxu0 %v283
        %305 = vmatprep.subr.mxu0 0.0
        %306 = vmatpush1.msra.mxu0 %v282
        %307 = vmatprep.subr.mxu0 0.0
        %308 = vmatpush1.msra.mxu0 %v281
        %309 = vmatprep.subr.mxu0 0.0
        %310 = vmatpush1.msra.mxu0 %v280
        %311 = vmatprep.subr.mxu0 0.0
        %312 = vmatpush1.msra.mxu0 %v279
        %313 = vmatprep.subr.mxu0 0.0
        %314 = vmatpush1.msra.mxu0 %v278
        %315 = vmatprep.subr.mxu0 0.0
        %316 = vmatpush1.msra.mxu0 %v277
        %317 = vmatprep.subr.mxu0 0.0
        %318 = vmatpush1.msra.mxu0 %v276
        %319 = vmatprep.subr.mxu0 0.0
        %320 = vmatpush1.msra.mxu0 %v275
        %321 = vmatprep.subr.mxu0 0.0
        %322 = vmatpush1.msra.mxu0 %v274
        %323 = vmatprep.subr.mxu0 0.0
        %324 = vmatpush1.msra.mxu0 %v273
        %325 = vmatprep.subr.mxu0 0.0
        %326 = vmatpush1.msra.mxu0 %v272
        %327 = vmatprep.subr.mxu0 0.0
        %328 = vmatpush1.msra.mxu0 %v271
        %329 = vmatprep.subr.mxu0 0.0
        %330 = vmatpush1.msra.mxu0 %v270
        %331 = vmatprep.subr.mxu0 0.0
        %332 = vmatpush1.msra.mxu0 %v269
        %333 = vmatprep.subr.mxu0 0.0
        %334 = vmatpush2.msra.mxu0 %v300
        %335 = vmatprep.subr.mxu0 0.0
        %336 = vmatpush2.msra.mxu0 %v299
        %337 = vmatprep.subr.mxu0 0.0
        %338 = vmatpush2.msra.mxu0 %v298
        %339 = vmatprep.subr.mxu0 0.0
        %340 = vmatpush2.msra.mxu0 %v297
        %341 = vmatprep.subr.mxu0 0.0
        %342 = vmatpush2.msra.mxu0 %v296
        %343 = vmatprep.subr.mxu0 0.0
        %344 = vmatpush2.msra.mxu0 %v295
        %345 = vmatprep.subr.mxu0 0.0
        %346 = vmatpush2.msra.mxu0 %v294
        %347 = vmatprep.subr.mxu0 0.0
        %348 = vmatpush2.msra.mxu0 %v293
        %349 = vmatprep.subr.mxu0 0.0
        %350 = vmatpush2.msra.mxu0 %v292
        %351 = vmatprep.subr.mxu0 0.0
        %352 = vmatpush2.msra.mxu0 %v291
        %353 = vmatprep.subr.mxu0 0.0
        %354 = vmatpush2.msra.mxu0 %v290
        %355 = vmatprep.subr.mxu0 0.0
        %356 = vmatpush2.msra.mxu0 %v289
        %357 = vmatprep.subr.mxu0 0.0
        %358 = vmatpush2.msra.mxu0 %v288
        %359 = vmatprep.subr.mxu0 0.0
        %360 = vmatpush2.msra.mxu0 %v287
        %361 = vmatprep.subr.mxu0 0.0
        %362 = vmatpush2.msra.mxu0 %v286
        %363 = vmatprep.subr.mxu0 0.0
        %364 = vmatpush2.msra.mxu0 %v285
        %365 = vmatprep.mubr.f32.mxu0 %v268
        %366 = vmatmul.mubr.f32.gmra.mxu0 %v267
        %v367 = vpop.f32.mrf.mxu0
        %v368 = vadd.f32 0.0, %v367
        %v369 = vpop.f32.mrf.mxu0
        %370 = vdwg.mxu0
        %v371 = vadd.f32 %v266, %v368
        %372 = vst [vmem:[%s248] sm:$0xff] %v371
        %s373 = sand.u32 %s132, 1
        %s374 = scalar_lea.sflag [#allocation4], %s373
        %s375 = sand.u32 %s132, 1
        %s376 = smul.addr %s375, 8
        %s377 = scalar_lea.vmem [#allocation7], %s376
        // Predicated region
        $region45: #{tpu_custom_call.1} parent=31 // pred_check
          %p378 = pneg %p142
        $region46: #{tpu_custom_call.1} parent=31 // pred_check_branch
          %380 = sbr.rel (%p378) target = $region48
        $region47: #{tpu_custom_call.1} parent=31 // pred_region
          %s382 = ssub.s32 128, 128
          %383 = vsyncadd %s374, %s382
          %s384 = sadd.s32 %s27, %s26
          %s385 = smul.addr %s384, 128
          %s386 = scalar_lea.hbm %s3, %s385
          %s388 = sshll.u32 %s377, 4
          %s389 = int_to_ptr.vmem [resolvable:$true] %s388
          %391 = dma.vmem_to_hbm [thread:$0]  %s389, 128, %s386, %s374
        $region48: #{tpu_custom_call.1} parent=31 // pred_fallthru
          _
      $region32: #{tpu_custom_call.1} parent=5 // pred_fallthru
        _
      %p392 = scmp.le.s32.totalorder 2, %s16
      // Predicated region
      $region49: #{tpu_custom_call.1} parent=5 // pred_check
        %p393 = pneg %p392
      $region50: #{tpu_custom_call.1} parent=5 // pred_check_branch
        %395 = sbr.rel (%p393) target = $region52
      $region51: #{tpu_custom_call.1} parent=5 // pred_region
        %s396 = ssub.s32 %s16, 2
        // Predicated region
        $region53: #{tpu_custom_call.1} parent=51 // pred_check
          %p397 = pneg %p148
        $region54: #{tpu_custom_call.1} parent=51 // pred_check_branch
          %399 = sbr.rel (%p397) target = $region56
        $region55: #{tpu_custom_call.1} parent=51 // pred_region
          %s400 = sand.u32 %s133, 1
          %s401 = scalar_lea.sflag [#allocation4], %s400
          %s402 = sand.u32 %s133, 1
          %s403 = smul.addr %s402, 8
          %s404 = scalar_lea.vmem [#allocation7], %s403
          %405 = dma.done %s401, 128
        $region56: #{tpu_custom_call.1} parent=51 // pred_fallthru
          _
      $region52: #{tpu_custom_call.1} parent=5 // pred_fallthru
        _
    $region6: #{tpu_custom_call.1} parent=1 // loop_footer
      %s20 = sadd.s32 1, %s16
    $region7: #{tpu_custom_call.1} parent=1 // loop_footer_branch
      %15 = sbr.rel target = $region3
    $region8: #{tpu_custom_call.1} parent=1 // loop_exit
      _
    %406 = vsyncpa [#allocation3], 1
    %s407 = scalar_lea.sflag [#allocation3], 1
    %408 = vsyncpa %s407, 1
    %409 = vsyncpa [#allocation6], 1
    %410 = vsyncpa [#allocation4], 1
    %s411 = scalar_lea.sflag [#allocation4], 1
    %412 = vsyncpa %s411, 1

</llo_original>
